<compile_context>
chip_gen: v6e
topology: v6e:2x2x1
jax: 0.10.0
libtpu: 0.0.40
codegen_flags: <defaults>
</compile_context>

<pallas_src>
import functools

import jax
import jax.numpy as jnp
import numpy as np
from jax.experimental import pallas as pl
from jax.experimental.pallas import tpu as pltpu

_LANE = 128
_PAYLOAD_TARGET = 8 * 1024 * 1024      # per-grid-step HBM payload target (sweepable 4-16 MiB)


# --------------------------------------------------------------------------------------
# constant folding (mirrors the f32 PyTorch forward exactly)
# --------------------------------------------------------------------------------------
def _fold_constants(gamma, alpha):
    """Precompute the 4 possible f32 outputs of the loss."""
    one = np.float32(1.0)
    lo = np.float32(1e-15)
    hi = np.float32(1.0 - 1e-15)          # == 1.0 in f32, exactly as the f32 reference sees it
    p_c0 = np.minimum(np.maximum(np.float32(0.0), lo), hi)    # clip(argmax == 0)
    p_nc0 = np.minimum(np.maximum(one, lo), hi)                # clip(argmax >= 1)
    if alpha is None:
        at_t = one
        at_f = one
    else:
        at_t = np.float32(alpha)
        at_f = np.float32(1.0 - alpha)
    g = np.float32(gamma)

    def _loss(at, pt):
        with np.errstate(divide="ignore", invalid="ignore"):
            return np.float32(-at) * np.power(one - pt, g) * np.log(pt)

    return (
        float(_loss(at_t, p_c0)),          # y != 0, class 0 is argmax
        float(_loss(at_t, p_nc0)),         # y != 0, class 0 not argmax
        float(_loss(at_f, one - p_c0)),    # y == 0, class 0 is argmax
        float(_loss(at_f, one - p_nc0)),   # y == 0, class 0 not argmax  (+inf, as in torch f32)
    )


# --------------------------------------------------------------------------------------
# kernels
# --------------------------------------------------------------------------------------
def _focal_kernel(pred_ref, true_ref, out_ref, *, num_classes, consts):
    """Generic kernel.

    dense path: pred (TB, C, TR, 128), true/out (TB, TR, 128)
    flat  path: pred (1,  C, TL),      true/out (1, TL)
    """
    v_y1_c0, v_y1_c1, v_y0_c0, v_y0_c1 = consts

    def cls_plane(c):
        if len(pred_ref.shape) == 4:            # dense layout
            return pred_ref[:, c, :, :]
        return pred_ref[:, c, :]                # flat layout

    y_mask = true_ref[...] != 0                 # y_true.bool()

    # first-occurrence argmax == 0  <=>  pred[0] >= max(pred[1:])
    c0 = cls_plane(0)
    rest = cls_plane(1)
    for c in range(2, num_classes):             # unrolled full-width vmax chain (C static)
        rest = jnp.maximum(rest, cls_plane(c))
    class0_wins = c0 >= rest

    out_pos = jnp.where(class0_wins, jnp.float32(v_y1_c0), jnp.float32(v_y1_c1))
    out_neg = jnp.where(class0_wins, jnp.float32(v_y0_c0), jnp.float32(v_y0_c1))
    out_ref[...] = jnp.where(y_mask, out_pos, out_neg)


def _focal_kernel_c1(true_ref, out_ref, *, consts):
    """num_classes == 1: argmax is always class 0 -> y_pred is never read (and never DMA'd)."""
    v_y1_c0, _, v_y0_c0, _ = consts
    y_mask = true_ref[...] != 0
    out_ref[...] = jnp.where(y_mask, jnp.float32(v_y1_c0), jnp.float32(v_y0_c0))


# --------------------------------------------------------------------------------------
# tiling heuristics
# --------------------------------------------------------------------------------------
def _vmem_limit_bytes():
    """Generation-aware scoped-VMEM limit: ~half of physical (64 MiB on v5e/v6e, 32 on v7x)."""
    phys = 128 * 1024 * 1024
    try:
        info = pltpu.get_tpu_info()
        phys = int(getattr(info, "vmem_capacity_bytes", phys))
    except Exception:
        pass
    return int(min(64 * 1024 * 1024, max(16 * 1024 * 1024, phys // 2)))


def _dense_tiles(N, C, R, payload_budget):
    """Pick (TB batch-images, TR rows-of-128-lanes) per grid step for the dense path."""
    bytes_per_row = (C + 2) * _LANE * 4           # pred + true + out HBM bytes per row per image
    rows_budget = max(1, payload_budget // bytes_per_row)

    if R <= 8:
        TR = R                                    # full (short) row axis
    else:
        TR = max(8, min((R // 8) * 8, (rows_budget // 8) * 8))   # ragged last block is fine

    # Small images: block several batch images per step to amortize ~0.35 us/step overhead.
    TB = 1
    if TR >= R and N > 1:
        TB = int(max(1, min(N, rows_budget // max(R, 1))))

    # Megacore (v7x has 2 TensorCores): keep >=4 parallel grid steps when the problem allows.
    def steps(tb, tr):
        return (-(-N // tb)) * (-(-R // tr))

    while TB > 1 and steps(TB, TR) < 4:
        TB = max(1, TB // 2)
    while TR > 8 and steps(TB, TR) < 4:
        TR = max(8, ((TR // 2) + 7) // 8 * 8)
    return TB, TR


def _flat_tile(N, C, HW, payload_budget, vmem_limit):
    """Pick TL (spatial elements per step) for the lane-unaligned flat path."""
    by_payload = payload_budget // ((C + 2) * 4)
    # VMEM per spatial element: double-buffered blocks (sublane-padded to 8 rows) plus
    # ~5 block-sized f32 intermediates the compiler may keep live / spill.
    vmem_per_elem = (2 * ((-(-C // 8)) * 8 + 16) + 5 * 8) * 4
    by_vmem = (vmem_limit - (4 << 20)) // vmem_per_elem
    cap = max(_LANE, min(by_payload, by_vmem))

    if HW <= _LANE or (HW <= cap and N >= 4):
        return HW                                 # single full-extent spatial block per image

    TL = max(_LANE, (min(cap, HW) // _LANE) * _LANE)
    while TL > _LANE and N * (-(-HW // TL)) < 4:  # >=4 parallel steps for v7x when possible
        TL = max(_LANE, ((TL // 2) // _LANE) * _LANE)
    return TL


# --------------------------------------------------------------------------------------
# wrapper
# --------------------------------------------------------------------------------------
def focal_loss(y_pred, y_true, *, gamma, alpha=None):
    """y_pred: (N, C, H, W); y_true: (N, H, W) labels (nonzero == positive).

    Returns the per-pixel focal loss, shape (N, H, W), float32 (no reduction).
    NOTE: like the f32 PyTorch module, pixels with y_true == 0 whose argmax is a nonzero
    class evaluate to +inf; any downstream mean/sum will be inf.
    """
    N, C, H, W = y_pred.shape
    HW = H * W
    consts = _fold_constants(gamma, alpha)

    vmem_limit = _vmem_limit_bytes()
    payload_budget = min(_PAYLOAD_TARGET, max(1 << 20, (vmem_limit - (8 << 20)) // 3))

    cost = pl.CostEstimate(
        flops=int((C + 3) * N * HW),
        transcendentals=0,
        bytes_accessed=int(4 * N * HW * (C + 2)),
    )
    cparams = pltpu.CompilerParams(
        dimension_semantics=("parallel", "parallel"),
        vmem_limit_bytes=int(vmem_limit),
    )

    if HW % _LANE == 0:
        # ---- dense path: spatial axis folds exactly into (rows, 128) lane planes (free) ----
        R = HW // _LANE
        true = y_true.reshape(N, R, _LANE)
        TB, TR = _dense_tiles(N, C, R, payload_budget)
        grid = (pl.cdiv(N, TB), pl.cdiv(R, TR))
        true_spec = pl.BlockSpec((TB, TR, _LANE), lambda b, r: (b, r, 0))
        out_spec = pl.BlockSpec((TB, TR, _LANE), lambda b, r: (b, r, 0))
        out_shape = jax.ShapeDtypeStruct((N, R, _LANE), jnp.float32)
        if C == 1:
            kernel = functools.partial(_focal_kernel_c1, consts=consts)
            in_specs, args = [true_spec], (true,)
        else:
            pred = y_pred.reshape(N, C, R, _LANE)
            pred_spec = pl.BlockSpec((TB, C, TR, _LANE), lambda b, r: (b, 0, r, 0))
            kernel = functools.partial(_focal_kernel, num_classes=C, consts=consts)
            in_specs, args = [pred_spec, true_spec], (pred, true)
    else:
        # ---- flat path: consume y_pred in its native (N, C, HW) layout ----
        # No wrapper-side pad/copy of the big tensor; the final lane block is ragged
        # (out-of-bounds reads feed discarded lanes, out-of-bounds writes are masked).
        true = y_true.reshape(N, HW)
        TL = _flat_tile(N, C, HW, payload_budget, vmem_limit)
        grid = (N, pl.cdiv(HW, TL))
        true_spec = pl.BlockSpec((1, TL), lambda n, s: (n, s))
        out_spec = pl.BlockSpec((1, TL), lambda n, s: (n, s))
        out_shape = jax.ShapeDtypeStruct((N, HW), jnp.float32)
        if C == 1:
            kernel = functools.partial(_focal_kernel_c1, consts=consts)
            in_specs, args = [true_spec], (true,)
        else:
            pred = y_pred.reshape(N, C, HW)
            pred_spec = pl.BlockSpec((1, C, TL), lambda n, s: (n, 0, s))
            kernel = functools.partial(_focal_kernel, num_classes=C, consts=consts)
            in_specs, args = [pred_spec, true_spec], (pred, true)

    out = pl.pallas_call(
        kernel,
        grid=grid,
        in_specs=in_specs,
        out_specs=out_spec,
        out_shape=out_shape,
        compiler_params=cparams,
        cost_estimate=cost,
    )(*args)
    return out.reshape(N, H, W)


# --------------------------------------------------------------------------------------
# pure-JAX reference (mirrors the PyTorch module)
# --------------------------------------------------------------------------------------
def _focal_loss_ref(y_pred, y_true, *, gamma, alpha=None):
    p = jnp.argmax(y_pred, axis=1).astype(jnp.float32)
    p = jnp.clip(p, 1e-15, 1.0 - 1e-15)
    yb = y_true.astype(bool)
    pt = jnp.where(yb, p, 1.0 - p)
    if alpha is None:
        at = jnp.ones_like(pt)
    else:
        at = jnp.where(yb, jnp.float32(alpha), jnp.float32(1.0 - alpha))
    return -at * (1.0 - pt) ** gamma * jnp.log(pt)


if __name__ == "__main__":
    key = jax.random.PRNGKey(0)
    keys = jax.random.split(key, 8)
    gamma, alpha = 2.0, 0.25

    # 1) main dense path (HW multiple of 128)
    N, C, H, W = 2, 4, 16, 16
    y_pred = jax.random.normal(keys[0], (N, C, H, W), dtype=jnp.float32)
    y_true = jax.random.bernoulli(keys[1], 0.5, (N, H, W)).astype(jnp.float32)
    out = jax.block_until_ready(focal_loss(y_pred, y_true, gamma=gamma, alpha=alpha))
    ref = _focal_loss_ref(y_pred, y_true, gamma=gamma, alpha=alpha)
    assert out.shape == (N, H, W) and out.dtype == jnp.float32
    assert jnp.allclose(out, ref, rtol=1e-5, atol=1e-5), "mismatch vs reference"

    # 2) alpha=None branch
    out2 = jax.block_until_ready(focal_loss(y_pred, y_true, gamma=gamma, alpha=None))
    ref2 = _focal_loss_ref(y_pred, y_true, gamma=gamma, alpha=None)
    assert jnp.allclose(out2, ref2, rtol=1e-5, atol=1e-5), "mismatch (alpha=None)"

    # 3) lane-unaligned spatial size > 128 -> flat path with ragged lane blocks (no pred pad)
    N2, C2, H2, W2 = 2, 3, 20, 20
    y_pred3 = jax.random.normal(keys[2], (N2, C2, H2, W2), dtype=jnp.float32)
    y_true3 = jax.random.bernoulli(keys[3], 0.5, (N2, H2, W2)).astype(jnp.float32)
    out3 = jax.block_until_ready(focal_loss(y_pred3, y_true3, gamma=gamma, alpha=alpha))
    ref3 = _focal_loss_ref(y_pred3, y_true3, gamma=gamma, alpha=alpha)
    assert out3.shape == (N2, H2, W2)
    assert jnp.allclose(out3, ref3, rtol=1e-5, atol=1e-5), "mismatch (ragged lane blocks)"

    # 4) tiny lane-unaligned spatial size (< 128) -> flat path, single full-extent block
    N3, C3, H3, W3 = 2, 3, 10, 10
    y_pred4 = jax.random.normal(keys[4], (N3, C3, H3, W3), dtype=jnp.float32)
    y_true4 = jax.random.bernoulli(keys[5], 0.5, (N3, H3, W3)).astype(jnp.float32)
    out4 = jax.block_until_ready(focal_loss(y_pred4, y_true4, gamma=gamma, alpha=alpha))
    ref4 = _focal_loss_ref(y_pred4, y_true4, gamma=gamma, alpha=alpha)
    assert out4.shape == (N3, H3, W3)
    assert jnp.allclose(out4, ref4, rtol=1e-5, atol=1e-5), "mismatch (small unaligned)"

    # 5) single-class case -> y_pred is never DMA'd
    y_pred5 = jax.random.normal(keys[6], (2, 1, 16, 16), dtype=jnp.float32)
    y_true5 = jax.random.bernoulli(keys[7], 0.5, (2, 16, 16)).astype(jnp.float32)
    out5 = jax.block_until_ready(focal_loss(y_pred5, y_true5, gamma=gamma, alpha=alpha))
    ref5 = _focal_loss_ref(y_pred5, y_true5, gamma=gamma, alpha=alpha)
    assert jnp.allclose(out5, ref5, rtol=1e-5, atol=1e-5), "mismatch (C == 1)"

    print("KERNEL_OK")
</pallas_src>

<mosaic_0001>
module attributes {stable_mosaic.version = 11 : i64} {
  func.func @_focal_kernel(%arg0: i32, %arg1: i32, %arg2: memref<1x4x2x128xf32, #tpu.memory_space<vmem>>, %arg3: memref<1x2x128xf32, #tpu.memory_space<vmem>>, %arg4: memref<1x2x128xf32, #tpu.memory_space<vmem>>) attributes {dimension_semantics = [#tpu.dimension_semantics<parallel>, #tpu.dimension_semantics<parallel>], iteration_bounds = array<i64: 2, 1>, scalar_prefetch = 0 : i64, scratch_operands = 0 : i64, tpu.core_type = #tpu.core_type<tc>, window_params = [{transform_indices = @transform_0, window_bounds = array<i64: 1, 4, 2, 128>}, {transform_indices = @transform_1, window_bounds = array<i64: 1, 2, 128>}, {transform_indices = @transform_2, window_bounds = array<i64: 1, 2, 128>}]} {
    %c0 = arith.constant 0 : index
    %c0_0 = arith.constant 0 : index
    %c0_1 = arith.constant 0 : index
    %0 = vector.load %arg3[%c0, %c0_0, %c0_1] : memref<1x2x128xf32, #tpu.memory_space<vmem>>, vector<1x2x128xf32>
    %cst = arith.constant 0.000000e+00 : f32
    %1 = vector.broadcast %cst : f32 to vector<1x2x128xf32>
    %2 = arith.cmpf one, %0, %1 : vector<1x2x128xf32>
    %c0_2 = arith.constant 0 : index
    %c0_3 = arith.constant 0 : index
    %c0_4 = arith.constant 0 : index
    %c0_5 = arith.constant 0 : index
    %3 = vector.load %arg2[%c0_2, %c0_3, %c0_4, %c0_5] : memref<1x4x2x128xf32, #tpu.memory_space<vmem>>, vector<1x1x2x128xf32>
    %4 = vector.shape_cast %3 : vector<1x1x2x128xf32> to vector<1x2x128xf32>
    %c0_6 = arith.constant 0 : index
    %c1 = arith.constant 1 : index
    %c0_7 = arith.constant 0 : index
    %c0_8 = arith.constant 0 : index
    %5 = vector.load %arg2[%c0_6, %c1, %c0_7, %c0_8] : memref<1x4x2x128xf32, #tpu.memory_space<vmem>>, vector<1x1x2x128xf32>
    %6 = vector.shape_cast %5 : vector<1x1x2x128xf32> to vector<1x2x128xf32>
    %c0_9 = arith.constant 0 : index
    %c2 = arith.constant 2 : index
    %c0_10 = arith.constant 0 : index
    %c0_11 = arith.constant 0 : index
    %7 = vector.load %arg2[%c0_9, %c2, %c0_10, %c0_11] : memref<1x4x2x128xf32, #tpu.memory_space<vmem>>, vector<1x1x2x128xf32>
    %8 = vector.shape_cast %7 : vector<1x1x2x128xf32> to vector<1x2x128xf32>
    %9 = arith.maximumf %6, %8 : vector<1x2x128xf32>
    %c0_12 = arith.constant 0 : index
    %c3 = arith.constant 3 : index
    %c0_13 = arith.constant 0 : index
    %c0_14 = arith.constant 0 : index
    %10 = vector.load %arg2[%c0_12, %c3, %c0_13, %c0_14] : memref<1x4x2x128xf32, #tpu.memory_space<vmem>>, vector<1x1x2x128xf32>
    %11 = vector.shape_cast %10 : vector<1x1x2x128xf32> to vector<1x2x128xf32>
    %12 = arith.maximumf %9, %11 : vector<1x2x128xf32>
    %13 = arith.cmpf oge, %4, %12 : vector<1x2x128xf32>
    %cst_15 = arith.constant 8.63469409 : f32
    %cst_16 = arith.constant -0.000000e+00 : f32
    %14 = vector.broadcast %cst_15 : f32 to vector<1x2x128xf32>
    %15 = vector.broadcast %cst_16 : f32 to vector<1x2x128xf32>
    %16 = arith.select %13, %14, %15 : vector<1x2x128xi1>, vector<1x2x128xf32>
    %cst_17 = arith.constant -0.000000e+00 : f32
    %cst_18 = arith.constant 0x7F800000 : f32
    %17 = vector.broadcast %cst_17 : f32 to vector<1x2x128xf32>
    %18 = vector.broadcast %cst_18 : f32 to vector<1x2x128xf32>
    %19 = arith.select %13, %17, %18 : vector<1x2x128xi1>, vector<1x2x128xf32>
    %20 = arith.select %2, %16, %19 : vector<1x2x128xi1>, vector<1x2x128xf32>
    %c0_19 = arith.constant 0 : index
    %c0_20 = arith.constant 0 : index
    %c0_21 = arith.constant 0 : index
    %21 = vector.load %arg4[%c0_19, %c0_20, %c0_21] : memref<1x2x128xf32, #tpu.memory_space<vmem>>, vector<1x2x128xf32>
    tpu.vector_store %arg4[%c0_19, %c0_20, %c0_21], %20 {strides = array<i32>} : memref<1x2x128xf32, #tpu.memory_space<vmem>>, vector<1x2x128xf32>,
    return
  }
  func.func @transform_0(%arg0: i32, %arg1: i32) -> (i32, i32, i32, i32) {
    %c0_i32 = arith.constant 0 : i32
    %c0_i32_0 = arith.constant 0 : i32
    %c0_i32_1 = arith.constant 0 : i32
    return %arg0, %c0_i32, %arg1, %c0_i32_0 : i32, i32, i32, i32
  }
  func.func @transform_1(%arg0: i32, %arg1: i32) -> (i32, i32, i32) {
    %c0_i32 = arith.constant 0 : i32
    %c0_i32_0 = arith.constant 0 : i32
    return %arg0, %arg1, %c0_i32 : i32, i32, i32
  }
  func.func @transform_2(%arg0: i32, %arg1: i32) -> (i32, i32, i32) {
    %c0_i32 = arith.constant 0 : i32
    %c0_i32_0 = arith.constant 0 : i32
    return %arg0, %arg1, %c0_i32 : i32, i32, i32
  }
}

</mosaic_0001>

<llo_original>
// kernel: tpu_custom_call.1
$region0: #{tpu_custom_call.1}
  #allocation0 [shape = 'u32[]', space=smem, size = 0x4, offset = 0x4, fixed_abs, tag = 'smem constant byte address 0x4 - core index']
  #allocation1 [shape = 'u32[144,128]{1,0:T(1,128)}', space=vmem, size = 0x12000, scoped, tag = 'internal scratch']
  %s0 = inlined_call_operand.hbm [shape: f32[2,4,2,128], index: 0, kind: input, shape index: {}]
  %s1 = inlined_call_operand.hbm [shape: f32[2,2,128], index: 1, kind: input, shape index: {}]
  %s2 = inlined_call_operand.hbm [shape: f32[2,2,128], index: 2, kind: output, shape index: {}]
  %s3 = sld [smem:[#allocation0]]
  $region49: #{tpu_custom_call.1} parent=0
    _
  %s5 = ssub.s32 1, %s3
  %s6 = scalar_select 0, %s5, %s3
  $region1: #{tpu_custom_call.1} parent=0
    #allocation2 [shape = 'u8[8192]{0}', space=vmem, size = 0x2000, scoped, tag = 'input window, operand 0']
    #allocation3 [shape = 's32[2]{0}', space=sflag, size = 0x8, scoped, tag = 'scoped memory for tpu_custom_call.1']
    #allocation4 [shape = 's32[2]{0}', space=sflag, size = 0x8, scoped, tag = 'scoped memory for tpu_custom_call.1']
    #allocation5 [shape = 'u8[2048]{0}', space=vmem, size = 0x800, scoped, tag = 'input window, operand 1']
    #allocation6 [shape = 's32[2]{0}', space=sflag, size = 0x8, scoped, tag = 'scoped memory for tpu_custom_call.1']
    #allocation7 [shape = 'u8[2048]{0}', space=vmem, size = 0x800, scoped, tag = 'output window, operand 0']
    %7 = vsyncpa [#allocation3], 0
    %s8 = scalar_lea.sflag [#allocation3], 1
    %9 = vsyncpa %s8, 0
    %10 = vsyncpa [#allocation6], 0
    %s11 = scalar_lea.sflag [#allocation6], 1
    %12 = vsyncpa %s11, 0
    %13 = vsyncpa [#allocation4], 0
    %s14 = scalar_lea.sflag [#allocation4], 1
    %15 = vsyncpa %s14, 0
    loop: start=0, step=1, limit=4
    $region2: #{tpu_custom_call.1} parent=1 // loop_pre_header
      _
    $region3: #{tpu_custom_call.1} parent=1 // loop_header
      %s17 = sphi 0, %s21
      %p18 = scmp.ge.s32.totalorder %s17, 4
      %s24 = sphi 0, %s36
      %s25 = sphi 0, %s32
      %s26 = sphi 0, %s24
      %s27 = sphi 0, %s25
      %s28 = sphi 0, %s26
      %s29 = sphi 0, %s27
      %s41 = sphi 0, %s43
      %s44 = sphi 0, %s41
      %s45 = sphi 0, %s44
      %s61 = sphi 0, %s45
      %s69 = sphi 0, %s71
      %s72 = sphi 0, %s69
      %s73 = sphi 0, %s72
      %s89 = sphi 0, %s73
      %s97 = sphi 0, %s99
      %s100 = sphi 0, %s97
      %s101 = sphi 0, %s100
      %s117 = sphi 0, %s101
    $region4: #{tpu_custom_call.1} parent=1 // loop_header_branch
      %20 = sbr.rel (%p18) target = $region8
    $region5: #{tpu_custom_call.1} parent=1 // loop_body
      %s22 = ssub.s32 %s17, 1
      %s23 = ssub.s32 %s17, 2
      %s30 = sadd.s32 1, %s25
      %p31 = scmp.ge.s32.totalorder %s30, 1
      %s32 = scalar_select %p31, 0, %s30
      %s33 = sadd.s32 1, %s24
      %s34 = scalar_select %p31, %s33, %s24
      %p35 = scmp.ge.s32.totalorder %s34, 2
      %s36 = scalar_select %p35, 0, %s34
      %s37 = ssub.s32 %s24, %s36
      %s38 = ssub.s32 %s25, %s32
      %s39 = sor.u32 %s37, %s38
      %p40 = scmp.eq.s32.totalorder %s39, 0
      %s42 = sadd.s32 %s41, 1
      %s43 = scalar_select %p40, %s41, %s42
      %p46 = pneg %p40
      %p47 = scmp.eq.s32.totalorder %s17, 1
      %p48 = por %p46, %p47
      %p49 = scmp.ne.s32.totalorder %s41, %s44
      %p50 = scmp.eq.s32.totalorder %s17, 0
      %p51 = por %p49, %p50
      %p52 = scmp.ne.s32.totalorder %s41, %s44
      %p53 = scmp.eq.s32.totalorder %s22, 1
      %p54 = por %p52, %p53
      %p55 = scmp.ne.s32.totalorder %s44, %s45
      %p56 = scmp.eq.s32.totalorder %s22, 0
      %p57 = por %p55, %p56
      %p58 = scmp.ne.s32.totalorder %s44, %s45
      %p59 = scmp.eq.s32.totalorder %s23, 1
      %p60 = por %p58, %p59
      %p62 = scmp.ne.s32.totalorder %s45, %s61
      %p63 = scmp.eq.s32.totalorder %s23, 0
      %p64 = por %p62, %p63
      %s65 = ssub.s32 %s24, %s36
      %s66 = ssub.s32 %s25, %s32
      %s67 = sor.u32 %s65, %s66
      %p68 = scmp.eq.s32.totalorder %s67, 0
      %s70 = sadd.s32 %s69, 1
      %s71 = scalar_select %p68, %s69, %s70
      %p74 = pneg %p68
      %p75 = scmp.eq.s32.totalorder %s17, 1
      %p76 = por %p74, %p75
      %p77 = scmp.ne.s32.totalorder %s69, %s72
      %p78 = scmp.eq.s32.totalorder %s17, 0
      %p79 = por %p77, %p78
      %p80 = scmp.ne.s32.totalorder %s69, %s72
      %p81 = scmp.eq.s32.totalorder %s22, 1
      %p82 = por %p80, %p81
      %p83 = scmp.ne.s32.totalorder %s72, %s73
      %p84 = scmp.eq.s32.totalorder %s22, 0
      %p85 = por %p83, %p84
      %p86 = scmp.ne.s32.totalorder %s72, %s73
      %p87 = scmp.eq.s32.totalorder %s23, 1
      %p88 = por %p86, %p87
      %p90 = scmp.ne.s32.totalorder %s73, %s89
      %p91 = scmp.eq.s32.totalorder %s23, 0
      %p92 = por %p90, %p91
      %s93 = ssub.s32 %s24, %s36
      %s94 = ssub.s32 %s25, %s32
      %s95 = sor.u32 %s93, %s94
      %p96 = scmp.eq.s32.totalorder %s95, 0
      %s98 = sadd.s32 %s97, 1
      %s99 = scalar_select %p96, %s97, %s98
      %p102 = pneg %p96
      %p103 = scmp.eq.s32.totalorder %s17, 1
      %p104 = por %p102, %p103
      %p105 = scmp.ne.s32.totalorder %s97, %s100
      %p106 = scmp.eq.s32.totalorder %s17, 0
      %p107 = por %p105, %p106
      %p108 = scmp.ne.s32.totalorder %s97, %s100
      %p109 = scmp.eq.s32.totalorder %s22, 1
      %p110 = por %p108, %p109
      %p111 = scmp.ne.s32.totalorder %s100, %s101
      %p112 = scmp.eq.s32.totalorder %s22, 0
      %p113 = por %p111, %p112
      %p114 = scmp.ne.s32.totalorder %s100, %s101
      %p115 = scmp.eq.s32.totalorder %s23, 1
      %p116 = por %p114, %p115
      %p118 = scmp.ne.s32.totalorder %s101, %s117
      %p119 = scmp.eq.s32.totalorder %s23, 0
      %p120 = por %p118, %p119
      %p121 = scmp.le.s32.totalorder 1, %s17
      %p122 = scmp.lt.s32.totalorder %s17, 3
      %p123 = pnand %p121, %p122
      %p124 = pneg %p123
      // Predicated region
      $region9: #{tpu_custom_call.1} parent=5 // pred_check
        _
      $region10: #{tpu_custom_call.1} parent=5 // pred_check_branch
        %126 = sbr.rel (%p123) target = $region12
      $region11: #{tpu_custom_call.1} parent=5 // pred_region
        %s127 = ssub.s32 %s17, 1
      $region12: #{tpu_custom_call.1} parent=5 // pred_fallthru
        _
      %p128 = scmp.lt.s32.totalorder %s17, 2
      // Predicated region
      $region13: #{tpu_custom_call.1} parent=5 // pred_check
        %p129 = pneg %p128
      $region14: #{tpu_custom_call.1} parent=5 // pred_check_branch
        %131 = sbr.rel (%p129) target = $region16
      $region15: #{tpu_custom_call.1} parent=5 // pred_region
        // Predicated region
        $region17: #{tpu_custom_call.1} parent=15 // pred_check
          %p132 = pneg %p51
        $region18: #{tpu_custom_call.1} parent=15 // pred_check_branch
          %134 = sbr.rel (%p132) target = $region20
        $region19: #{tpu_custom_call.1} parent=15 // pred_region
          %s135 = sand.u32 %s41, 1
          %s136 = scalar_lea.sflag [#allocation3], %s135
          %s137 = sand.u32 %s41, 1
          %s138 = smul.addr %s137, 8
          %s139 = scalar_lea.vmem [#allocation2], %s138
          %s141 = ssub.s32 128, 128
          %142 = vsyncadd %s136, %s141
          %s143 = smul.addr %s24, 4
          %s144 = sadd.s32 %s25, %s143
          %s145 = smul.addr %s144, 32
          %s146 = scalar_lea.hbm %s0, %s145
          %s147 = sshll.u32 %s139, 4
          %s148 = int_to_ptr.vmem [resolvable:$true] %s147
          %153 = dma.hbm_to_vmem [thread:$0]  %s146, 128, %s148, %s136, 32, 32, 2
        $region20: #{tpu_custom_call.1} parent=15 // pred_fallthru
          _
        // Predicated region
        $region21: #{tpu_custom_call.1} parent=15 // pred_check
          %p154 = pneg %p79
        $region22: #{tpu_custom_call.1} parent=15 // pred_check_branch
          %156 = sbr.rel (%p154) target = $region24
        $region23: #{tpu_custom_call.1} parent=15 // pred_region
          %s157 = sand.u32 %s69, 1
          %s158 = scalar_lea.sflag [#allocation6], %s157
          %s159 = sand.u32 %s69, 1
          %s160 = smul.addr %s159, 2
          %s161 = scalar_lea.vmem [#allocation5], %s160
          %s163 = ssub.s32 32, 32
          %164 = vsyncadd %s158, %s163
          %s165 = sadd.s32 %s25, %s24
          %s166 = smul.addr %s165, 32
          %s167 = scalar_lea.hbm %s1, %s166
          %s169 = sshll.u32 %s161, 4
          %s170 = int_to_ptr.vmem [resolvable:$true] %s169
          %172 = dma.hbm_to_vmem [thread:$0]  %s167, 32, %s170, %s158
        $region24: #{tpu_custom_call.1} parent=15 // pred_fallthru
          _
      $region16: #{tpu_custom_call.1} parent=5 // pred_fallthru
        _
      %p173 = scmp.le.s32.totalorder 1, %s17
      %p174 = scmp.lt.s32.totalorder %s17, 3
      %p175 = pnand %p173, %p174
      %p176 = pneg %p175
      // Predicated region
      $region25: #{tpu_custom_call.1} parent=5 // pred_check
        _
      $region26: #{tpu_custom_call.1} parent=5 // pred_check_branch
        %178 = sbr.rel (%p175) target = $region28
      $region27: #{tpu_custom_call.1} parent=5 // pred_region
        %s179 = ssub.s32 %s17, 1
        %s180 = sand.u32 %s44, 1
        %s181 = scalar_lea.sflag [#allocation3], %s180
        %s182 = sand.u32 %s44, 1
        %s183 = smul.addr %s182, 8
        %s184 = scalar_lea.vmem [#allocation2], %s183
        // Predicated region
        $region29: #{tpu_custom_call.1} parent=27 // pred_check
          %p185 = pneg %p57
        $region30: #{tpu_custom_call.1} parent=27 // pred_check_branch
          %187 = sbr.rel (%p185) target = $region32
        $region31: #{tpu_custom_call.1} parent=27 // pred_region
          %188 = dma.done %s181, 128
        $region32: #{tpu_custom_call.1} parent=27 // pred_fallthru
          _
        %s189 = sand.u32 %s72, 1
        %s190 = scalar_lea.sflag [#allocation6], %s189
        %s191 = sand.u32 %s72, 1
        %s192 = smul.addr %s191, 2
        %s193 = scalar_lea.vmem [#allocation5], %s192
        // Predicated region
        $region33: #{tpu_custom_call.1} parent=27 // pred_check
          %p194 = pneg %p85
        $region34: #{tpu_custom_call.1} parent=27 // pred_check_branch
          %196 = sbr.rel (%p194) target = $region36
        $region35: #{tpu_custom_call.1} parent=27 // pred_region
          %197 = dma.done %s190, 32
        $region36: #{tpu_custom_call.1} parent=27 // pred_fallthru
          _
        %s198 = sand.u32 %s44, 1
        %s199 = scalar_lea.sflag [#allocation3], %s198
        %s200 = sand.u32 %s44, 1
        %s201 = smul.addr %s200, 8
        %s202 = scalar_lea.vmem [#allocation2], %s201
        %p203 = pneg %p57
        %p204 = pneg %p54
        %s205 = sand.u32 %s72, 1
        %s206 = scalar_lea.sflag [#allocation6], %s205
        %s207 = sand.u32 %s72, 1
        %s208 = smul.addr %s207, 2
        %s209 = scalar_lea.vmem [#allocation5], %s208
        %p210 = pneg %p85
        %p211 = pneg %p82
        %p212 = pneg %p113
        %p213 = pneg %p110
        %s214 = sand.u32 %s100, 1
        %s215 = scalar_lea.sflag [#allocation4], %s214
        %s216 = sand.u32 %s100, 1
        %s217 = smul.addr %s216, 2
        %s218 = scalar_lea.vmem [#allocation7], %s217
        %v219 = vld [vmem:[%s193] sm:$0x3]
        %vm220 = vcmp.ne.f32.partialorder %v219, 0.0
        %v221 = vld [vmem:[%s184] sm:$0x3]
        %s222 = scalar_lea.vmem %s184, 2 [#allocation2]
        %v223 = vld [vmem:[%s222] sm:$0x3]
        %s224 = scalar_lea.vmem %s184, 4 [#allocation2]
        %v225 = vld [vmem:[%s224] sm:$0x3]
        %v226 = vmax.f32 %v223, %v225
        %s227 = scalar_lea.vmem %s184, 6 [#allocation2]
        %v228 = vld [vmem:[%s227] sm:$0x3]
        %v229 = vmax.f32 %v226, %v228
        %vm230 = vcmp.ge.f32.partialorder %v221, %v229
        %v231 = vsel %vm230, 8.634694, -0.0
        %v232 = vsel %vm230, -0.0, inf
        %v233 = vsel %vm220, %v231, %v232
        %234 = vst [vmem:[%s218] sm:$0x3] %v233
        %s235 = sand.u32 %s100, 1
        %s236 = scalar_lea.sflag [#allocation4], %s235
        %s237 = sand.u32 %s100, 1
        %s238 = smul.addr %s237, 2
        %s239 = scalar_lea.vmem [#allocation7], %s238
        // Predicated region
        $region37: #{tpu_custom_call.1} parent=27 // pred_check
          %p240 = pneg %p110
        $region38: #{tpu_custom_call.1} parent=27 // pred_check_branch
          %242 = sbr.rel (%p240) target = $region40
        $region39: #{tpu_custom_call.1} parent=27 // pred_region
          %s244 = ssub.s32 32, 32
          %245 = vsyncadd %s236, %s244
          %s246 = sadd.s32 %s27, %s26
          %s247 = smul.addr %s246, 32
          %s248 = scalar_lea.hbm %s2, %s247
          %s250 = sshll.u32 %s239, 4
          %s251 = int_to_ptr.vmem [resolvable:$true] %s250
          %253 = dma.vmem_to_hbm [thread:$0]  %s251, 32, %s248, %s236
        $region40: #{tpu_custom_call.1} parent=27 // pred_fallthru
          _
      $region28: #{tpu_custom_call.1} parent=5 // pred_fallthru
        _
      %p254 = scmp.le.s32.totalorder 2, %s17
      // Predicated region
      $region41: #{tpu_custom_call.1} parent=5 // pred_check
        %p255 = pneg %p254
      $region42: #{tpu_custom_call.1} parent=5 // pred_check_branch
        %257 = sbr.rel (%p255) target = $region44
      $region43: #{tpu_custom_call.1} parent=5 // pred_region
        %s258 = ssub.s32 %s17, 2
        // Predicated region
        $region45: #{tpu_custom_call.1} parent=43 // pred_check
          %p259 = pneg %p116
        $region46: #{tpu_custom_call.1} parent=43 // pred_check_branch
          %261 = sbr.rel (%p259) target = $region48
        $region47: #{tpu_custom_call.1} parent=43 // pred_region
          %s262 = sand.u32 %s101, 1
          %s263 = scalar_lea.sflag [#allocation4], %s262
          %s264 = sand.u32 %s101, 1
          %s265 = smul.addr %s264, 2
          %s266 = scalar_lea.vmem [#allocation7], %s265
          %267 = dma.done %s263, 32
        $region48: #{tpu_custom_call.1} parent=43 // pred_fallthru
          _
      $region44: #{tpu_custom_call.1} parent=5 // pred_fallthru
        _
    $region6: #{tpu_custom_call.1} parent=1 // loop_footer
      %s21 = sadd.s32 1, %s17
    $region7: #{tpu_custom_call.1} parent=1 // loop_footer_branch
      %16 = sbr.rel target = $region3
    $region8: #{tpu_custom_call.1} parent=1 // loop_exit
      _
    %268 = vsyncpa [#allocation3], 1
    %s269 = scalar_lea.sflag [#allocation3], 1
    %270 = vsyncpa %s269, 1
    %271 = vsyncpa [#allocation6], 1
    %s272 = scalar_lea.sflag [#allocation6], 1
    %273 = vsyncpa %s272, 1
    %274 = vsyncpa [#allocation4], 1
    %s275 = scalar_lea.sflag [#allocation4], 1
    %276 = vsyncpa %s275, 1

</llo_original>
